<compile_context>
chip_gen: v6e
topology: v6e:2x2x1
jax: 0.10.0
libtpu: 0.0.40
codegen_flags: <defaults>
</compile_context>

<pallas_src>
import math
from functools import partial

import jax
import jax.numpy as jnp
from jax.experimental import pallas as pl
from jax.experimental.pallas import tpu as pltpu

_LANES = 128
_SUBLANES = 8
_SMALL_ELEMS = 1 << 16          # below this, pure JAX beats a kernel launch
_TARGET_BLOCK_BYTES = 4 << 20   # ~4 MiB per output block per grid step


# --------------------------- kernels: plain layout ---------------------------
# Output blocks (tile_s, dim); used when dim is already a multiple of 128, or
# as a fallback when the packed layout cannot tile (masked stores, but correct).
def _freqs_plain_kernel(inv_freq_ref, freqs_ref, *, tile_s):
    t0 = pl.program_id(0) * tile_s
    row = jax.lax.broadcasted_iota(jnp.int32, freqs_ref.shape, 0)
    t = (row + t0).astype(jnp.float32)
    freqs_ref[...] = t * inv_freq_ref[...]


def _xpos_plain_kernel(inv_freq_ref, log_scale_ref, freqs_ref, scale_ref, *,
                       tile_s, half_seq, inv_scale_base):
    t0 = pl.program_id(0) * tile_s
    row = jax.lax.broadcasted_iota(jnp.int32, freqs_ref.shape, 0)
    t = (row + t0).astype(jnp.float32)
    freqs_ref[...] = t * inv_freq_ref[...]
    power = (t - jnp.float32(half_seq)) * jnp.float32(inv_scale_base)
    scale_ref[...] = jnp.exp(power * log_scale_ref[...])


# -------------------------- kernels: packed layout ---------------------------
# Output is an (n_super, tile_p, 128) slab whose row-major flat order equals the
# row-major flat order of (seq_len, dim): flat f <-> (t, c) = (f//dim, f%dim).
# t_base_ref[0, rp, l] = (rp*128 + l)//dim and inv_freq_ref / log_scale_ref hold
# the per-lane column values; each super-row advances t by t_per_super.
def _freqs_packed_kernel(t_base_ref, inv_freq_ref, freqs_ref, *,
                         tile_q, t_per_super):
    q0 = pl.program_id(0) * tile_q
    q = jax.lax.broadcasted_iota(jnp.int32, freqs_ref.shape, 0)
    t = ((q + q0) * t_per_super).astype(jnp.float32) + t_base_ref[...]
    freqs_ref[...] = t * inv_freq_ref[...]


def _xpos_packed_kernel(t_base_ref, inv_freq_ref, log_scale_ref,
                        freqs_ref, scale_ref, *,
                        tile_q, t_per_super, half_seq, inv_scale_base):
    q0 = pl.program_id(0) * tile_q
    q = jax.lax.broadcasted_iota(jnp.int32, freqs_ref.shape, 0)
    t = ((q + q0) * t_per_super).astype(jnp.float32) + t_base_ref[...]
    freqs_ref[...] = t * inv_freq_ref[...]
    power = (t - jnp.float32(half_seq)) * jnp.float32(inv_scale_base)
    scale_ref[...] = jnp.exp(power * log_scale_ref[...])


# ------------------------------- helpers -------------------------------------
def _pick_tile_rows(total_rows, row_bytes, *, align,
                    target_bytes=_TARGET_BLOCK_BYTES):
    """Rows per output block: multiple of `align`, ~target_bytes per output
    block, and split so the grid has >= 2 steps when the problem allows
    (v7x shards the "parallel" axis across its two TensorCores)."""
    if total_rows <= align:
        return total_rows
    rows = (target_bytes // max(row_bytes, 1)) // align * align
    rows = max(rows, align)
    if rows >= total_rows:
        if total_rows < 2 * align:
            return total_rows
        half = (total_rows + 1) // 2
        half = -(-half // align) * align          # ceil to align
        return min(half, total_rows)
    return rows


def _compiler_params(out_block_bytes, in_block_bytes):
    # Double-buffered pipeline footprint + margin; explicit so larger tiles
    # don't hit v5e's 16 MiB scoped-VMEM default.
    need = 2 * (out_block_bytes + in_block_bytes) + (4 << 20)
    vmem_limit = int(min(max(need, 16 << 20), 48 << 20))
    return pltpu.CompilerParams(dimension_semantics=("parallel",),
                                vmem_limit_bytes=vmem_limit)


# ------------------------------ module port ----------------------------------
class SinusoidalEmbeddings:
    """JAX/Pallas port of the PyTorch SinusoidalEmbeddings module."""

    def __init__(self, dim, scale_base=None, use_xpos=False, theta=10000):
        assert not (use_xpos and (scale_base is None))
        assert dim % 2 == 0, "dim must be even (matches torch.cat((f, f), -1))"
        self.dim = dim
        self.use_xpos = use_xpos
        self.scale_base = scale_base

        half_idx = jnp.arange(0, dim, 2, dtype=jnp.float32)
        inv_freq_half = 1.0 / (theta ** (half_idx / dim))        # (dim//2,)
        scale_half = (half_idx + 0.4 * dim) / (1.4 * dim)        # (dim//2,)
        # torch.cat((v, v), -1) done host-side; log precomputed so the kernel
        # only does exp() (EUP), never pow().
        self.inv_freq_full = jnp.concatenate([inv_freq_half, inv_freq_half])
        self.log_scale_full = jnp.log(jnp.concatenate([scale_half, scale_half]))

        # Packed (lane-dense) layout constants, used whenever dim is not a
        # multiple of 128 and the sequence length tiles evenly.
        if dim % _LANES != 0:
            period = math.lcm(dim, _LANES) // _LANES       # 128-lane rows / period
            tile_p = math.lcm(period, _SUBLANES)           # sublane-aligned period
            flat = jnp.arange(tile_p * _LANES)
            cols = flat % dim
            self._tile_p = tile_p
            self._t_per_super = (tile_p * _LANES) // dim
            self._t_base_packed = (flat // dim).astype(jnp.float32).reshape(
                1, tile_p, _LANES)
            self._inv_freq_packed = self.inv_freq_full[cols].reshape(
                1, tile_p, _LANES)
            self._log_scale_packed = self.log_scale_full[cols].reshape(
                1, tile_p, _LANES)
        else:
            self._tile_p = None

    # -- dispatch -------------------------------------------------------------
    def __call__(self, x):
        seq_len = int(x.shape[-2])
        dim = self.dim
        if seq_len * dim < _SMALL_ELEMS:
            return self._forward_jax(seq_len)
        if self._tile_p is not None and \
                (seq_len * dim) % (self._tile_p * _LANES) == 0:
            return self._forward_packed(seq_len)
        return self._forward_plain(seq_len)

    # -- tiny problems: pure JAX (launch overhead dominates otherwise) --------
    def _forward_jax(self, seq_len):
        t = jnp.arange(seq_len, dtype=jnp.float32)
        freqs = t[:, None] * self.inv_freq_full[None, :]
        if not self.use_xpos:
            return freqs, jnp.ones((1,), jnp.float32)
        power = (t - float(seq_len // 2)) * (1.0 / float(self.scale_base))
        scale = jnp.exp(power[:, None] * self.log_scale_full[None, :])
        return freqs, scale

    def _cost(self, seq_len, n_out, in_bytes):
        return pl.CostEstimate(
            flops=(3 if self.use_xpos else 1) * seq_len * self.dim,
            transcendentals=(seq_len * self.dim) if self.use_xpos else 0,
            bytes_accessed=n_out * seq_len * self.dim * 4 + in_bytes)

    # -- lane-dense packed path (dim not a multiple of 128) -------------------
    def _forward_packed(self, seq_len):
        dim = self.dim
        tile_p = self._tile_p
        n_super = (seq_len * dim) // (tile_p * _LANES)
        row_bytes = tile_p * _LANES * 4                       # per output
        tile_q = _pick_tile_rows(n_super, row_bytes, align=1)
        grid = (pl.cdiv(n_super, tile_q),)

        vec_spec = pl.BlockSpec((1, tile_p, _LANES), lambda i: (0, 0, 0))
        out_spec = pl.BlockSpec((tile_q, tile_p, _LANES), lambda i: (i, 0, 0))
        slab = jax.ShapeDtypeStruct((n_super, tile_p, _LANES), jnp.float32)
        n_out = 2 if self.use_xpos else 1
        n_in = 3 if self.use_xpos else 2
        in_bytes = n_in * row_bytes
        cparams = _compiler_params(n_out * tile_q * row_bytes, in_bytes)
        cost = self._cost(seq_len, n_out, in_bytes)

        if not self.use_xpos:
            freqs = pl.pallas_call(
                partial(_freqs_packed_kernel, tile_q=tile_q,
                        t_per_super=self._t_per_super),
                grid=grid, in_specs=[vec_spec, vec_spec], out_specs=out_spec,
                out_shape=slab, compiler_params=cparams, cost_estimate=cost,
            )(self._t_base_packed, self._inv_freq_packed)
            return freqs.reshape(seq_len, dim), jnp.ones((1,), jnp.float32)

        freqs, scale = pl.pallas_call(
            partial(_xpos_packed_kernel, tile_q=tile_q,
                    t_per_super=self._t_per_super,
                    half_seq=float(seq_len // 2),
                    inv_scale_base=1.0 / float(self.scale_base)),
            grid=grid, in_specs=[vec_spec, vec_spec, vec_spec],
            out_specs=(out_spec, out_spec), out_shape=(slab, slab),
            compiler_params=cparams, cost_estimate=cost,
        )(self._t_base_packed, self._inv_freq_packed, self._log_scale_packed)
        return freqs.reshape(seq_len, dim), scale.reshape(seq_len, dim)

    # -- plain layout (dim % 128 == 0, or packed gate failed) -----------------
    def _forward_plain(self, seq_len):
        dim = self.dim
        tile_s = _pick_tile_rows(seq_len, dim * 4, align=_SUBLANES)
        grid = (pl.cdiv(seq_len, tile_s),)
        inv_freq_in = self.inv_freq_full.reshape(1, dim)
        vec_spec = pl.BlockSpec((1, dim), lambda i: (0, 0))
        out_spec = pl.BlockSpec((tile_s, dim), lambda i: (i, 0))
        full = jax.ShapeDtypeStruct((seq_len, dim), jnp.float32)
        n_out = 2 if self.use_xpos else 1
        n_in = 2 if self.use_xpos else 1
        in_bytes = n_in * dim * 4
        cparams = _compiler_params(n_out * tile_s * dim * 4, in_bytes)
        cost = self._cost(seq_len, n_out, in_bytes)

        if not self.use_xpos:
            freqs = pl.pallas_call(
                partial(_freqs_plain_kernel, tile_s=tile_s),
                grid=grid, in_specs=[vec_spec], out_specs=out_spec,
                out_shape=full, compiler_params=cparams, cost_estimate=cost,
            )(inv_freq_in)
            return freqs, jnp.ones((1,), jnp.float32)

        log_scale_in = self.log_scale_full.reshape(1, dim)
        freqs, scale = pl.pallas_call(
            partial(_xpos_plain_kernel, tile_s=tile_s,
                    half_seq=float(seq_len // 2),
                    inv_scale_base=1.0 / float(self.scale_base)),
            grid=grid, in_specs=[vec_spec, vec_spec],
            out_specs=(out_spec, out_spec), out_shape=(full, full),
            compiler_params=cparams, cost_estimate=cost,
        )(inv_freq_in, log_scale_in)
        return freqs, scale


# ------------------------------ reference ------------------------------------
def _reference(x, dim, theta=10000, use_xpos=False, scale_base=None):
    """Pure-JAX reference mirroring the PyTorch forward."""
    seq_len = x.shape[-2]
    half_idx = jnp.arange(0, dim, 2, dtype=jnp.float32)
    inv_freq = 1.0 / (theta ** (half_idx / dim))
    t = jnp.arange(seq_len, dtype=jnp.float32)
    freqs = jnp.einsum("i,j->ij", t, inv_freq)
    freqs = jnp.concatenate([freqs, freqs], axis=-1)
    if not use_xpos:
        return freqs, jnp.ones((1,), dtype=jnp.float32)
    scale_vec = (half_idx + 0.4 * dim) / (1.4 * dim)
    power = (t - seq_len // 2) / scale_base
    scale = scale_vec[None, :] ** power[:, None]
    return freqs, jnp.concatenate([scale, scale], axis=-1)


if __name__ == "__main__":
    key = jax.random.PRNGKey(0)

    def run_case(seq, dim, use_xpos=False, scale_base=None, batch=2):
        x = jax.random.normal(key, (batch, seq, dim), dtype=jnp.float32)
        emb = SinusoidalEmbeddings(dim=dim, scale_base=scale_base,
                                   use_xpos=use_xpos)
        freqs, scale = emb(x)
        jax.block_until_ready((freqs, scale))
        rf, rs = _reference(x, dim=dim, use_xpos=use_xpos,
                            scale_base=scale_base)
        assert freqs.shape == rf.shape, (freqs.shape, rf.shape)
        assert scale.shape == rs.shape, (scale.shape, rs.shape)
        assert jnp.allclose(freqs, rf, atol=1e-4, rtol=1e-4), \
            f"freqs mismatch seq={seq} dim={dim} xpos={use_xpos}"
        assert jnp.allclose(scale, rs, atol=1e-4, rtol=1e-4), \
            f"scale mismatch seq={seq} dim={dim} xpos={use_xpos}"

    # Small shapes (batch=2, seq=8, hidden=32): pure-JAX short-circuit.
    run_case(seq=8, dim=32)
    run_case(seq=8, dim=32, use_xpos=True, scale_base=512)

    # Packed lane-dense Pallas path (dim | 128).
    run_case(seq=4096, dim=32)
    run_case(seq=4096, dim=32, use_xpos=True, scale_base=512)

    # Packed lane-dense Pallas path with dim not dividing 128 (period = 3 rows).
    run_case(seq=4096, dim=48, use_xpos=True, scale_base=512)

    # Plain path (dim already a multiple of 128).
    run_case(seq=1024, dim=256, use_xpos=True, scale_base=512)

    # Plain fallback for a dim/seq combo the packed layout cannot tile evenly.
    run_case(seq=2000, dim=48)

    print("KERNEL_OK")
</pallas_src>

<mosaic_0001>
module attributes {stable_mosaic.version = 11 : i64} {
  func.func @_freqs_packed_kernel(%arg0: i32, %arg1: memref<1x8x128xf32, #tpu.memory_space<vmem>>, %arg2: memref<1x8x128xf32, #tpu.memory_space<vmem>>, %arg3: memref<64x8x128xf32, #tpu.memory_space<vmem>>) attributes {dimension_semantics = [#tpu.dimension_semantics<parallel>], iteration_bounds = array<i64: 2>, scalar_prefetch = 0 : i64, scratch_operands = 0 : i64, tpu.core_type = #tpu.core_type<tc>, window_params = [{pipeline_mode = #tpu.pipeline_mode<synchronous>, transform_indices = @transform_0, window_bounds = array<i64: 1, 8, 128>}, {pipeline_mode = #tpu.pipeline_mode<synchronous>, transform_indices = @transform_1, window_bounds = array<i64: 1, 8, 128>}, {transform_indices = @transform_2, window_bounds = array<i64: 64, 8, 128>}]} {
    %c64_i32 = arith.constant 64 : i32
    %0 = arith.muli %arg0, %c64_i32 : i32
    %1 = tpu.iota {dimensions = array<i32: 0>} : vector<64x8x128xi32>
    %2 = vector.broadcast %0 : i32 to vector<64x8x128xi32>
    %3 = arith.addi %1, %2 : vector<64x8x128xi32>
    %c32_i32 = arith.constant 32 : i32
    %4 = vector.broadcast %c32_i32 : i32 to vector<64x8x128xi32>
    %5 = arith.muli %3, %4 : vector<64x8x128xi32>
    %6 = arith.sitofp %5 : vector<64x8x128xi32> to vector<64x8x128xf32>
    %c0 = arith.constant 0 : index
    %c0_0 = arith.constant 0 : index
    %c0_1 = arith.constant 0 : index
    %7 = vector.load %arg1[%c0, %c0_0, %c0_1] : memref<1x8x128xf32, #tpu.memory_space<vmem>>, vector<1x8x128xf32>
    %8 = vector.broadcast %7 : vector<1x8x128xf32> to vector<64x8x128xf32>
    %9 = arith.addf %6, %8 : vector<64x8x128xf32>
    %c0_2 = arith.constant 0 : index
    %c0_3 = arith.constant 0 : index
    %c0_4 = arith.constant 0 : index
    %10 = vector.load %arg2[%c0_2, %c0_3, %c0_4] : memref<1x8x128xf32, #tpu.memory_space<vmem>>, vector<1x8x128xf32>
    %11 = vector.broadcast %10 : vector<1x8x128xf32> to vector<64x8x128xf32>
    %12 = arith.mulf %9, %11 : vector<64x8x128xf32>
    %c0_5 = arith.constant 0 : index
    %c0_6 = arith.constant 0 : index
    %c0_7 = arith.constant 0 : index
    %13 = vector.load %arg3[%c0_5, %c0_6, %c0_7] : memref<64x8x128xf32, #tpu.memory_space<vmem>>, vector<64x8x128xf32>
    tpu.vector_store %arg3[%c0_5, %c0_6, %c0_7], %12 {strides = array<i32>} : memref<64x8x128xf32, #tpu.memory_space<vmem>>, vector<64x8x128xf32>,
    return
  }
  func.func @transform_0(%arg0: i32) -> (i32, i32, i32) {
    %c0_i32 = arith.constant 0 : i32
    %c0_i32_0 = arith.constant 0 : i32
    %c0_i32_1 = arith.constant 0 : i32
    %c0_i32_2 = arith.constant 0 : i32
    return %c0_i32, %c0_i32_0, %c0_i32_1 : i32, i32, i32
  }
  func.func @transform_1(%arg0: i32) -> (i32, i32, i32) {
    %c0_i32 = arith.constant 0 : i32
    %c0_i32_0 = arith.constant 0 : i32
    %c0_i32_1 = arith.constant 0 : i32
    %c0_i32_2 = arith.constant 0 : i32
    return %c0_i32, %c0_i32_0, %c0_i32_1 : i32, i32, i32
  }
  func.func @transform_2(%arg0: i32) -> (i32, i32, i32) {
    %c0_i32 = arith.constant 0 : i32
    %c0_i32_0 = arith.constant 0 : i32
    %c0_i32_1 = arith.constant 0 : i32
    return %arg0, %c0_i32, %c0_i32_0 : i32, i32, i32
  }
}

</mosaic_0001>

<llo_original>
// kernel: tpu_custom_call.1
$region0: #{tpu_custom_call.1}
  #allocation0 [shape = 'u32[]', space=smem, size = 0x4, offset = 0x4, fixed_abs, tag = 'smem constant byte address 0x4 - core index']
  #allocation1 [shape = 'u32[144,128]{1,0:T(1,128)}', space=vmem, size = 0x12000, scoped, tag = 'internal scratch']
  %s0 = inlined_call_operand.hbm [shape: f32[1,8,128], index: 0, kind: input, shape index: {}]
  %s1 = inlined_call_operand.hbm [shape: f32[1,8,128], index: 1, kind: input, shape index: {}]
  %s2 = inlined_call_operand.hbm [shape: f32[128,8,128], index: 2, kind: output, shape index: {}]
  %s3 = sld [smem:[#allocation0]]
  $region49: #{tpu_custom_call.1} parent=0
    _
  %s5 = ssub.s32 1, %s3
  %s6 = scalar_select 0, %s5, %s3
  $region1: #{tpu_custom_call.1} parent=0
    #allocation2 [shape = 'u8[4096]{0}', space=vmem, size = 0x1000, scoped, tag = 'input window, operand 0, single buffered']
    #allocation3 [shape = 's32[2]{0}', space=sflag, size = 0x8, scoped, tag = 'scoped memory for tpu_custom_call.1']
    #allocation4 [shape = 's32[2]{0}', space=sflag, size = 0x8, scoped, tag = 'scoped memory for tpu_custom_call.1']
    #allocation5 [shape = 'u8[4096]{0}', space=vmem, size = 0x1000, scoped, tag = 'input window, operand 1, single buffered']
    #allocation6 [shape = 's32[1]{0}', space=sflag, size = 0x4, scoped, tag = 'scoped memory for tpu_custom_call.1']
    #allocation7 [shape = 'u8[524288]{0}', space=vmem, size = 0x80000, scoped, tag = 'output window, operand 0']
    %7 = vsyncpa [#allocation3], 0
    %8 = vsyncpa [#allocation6], 0
    %9 = vsyncpa [#allocation4], 0
    %s10 = scalar_lea.sflag [#allocation4], 1
    %11 = vsyncpa %s10, 0
    loop: start=0, step=1, limit=4
    $region2: #{tpu_custom_call.1} parent=1 // loop_pre_header
      _
    $region3: #{tpu_custom_call.1} parent=1 // loop_header
      %s13 = sphi 0, %s17
      %p14 = scmp.ge.s32.totalorder %s13, 4
      %s21 = sphi 0, %s21
      %s23 = sphi 0, %s21
      %s24 = sphi 0, %s23
      %s38 = sphi 0, %s24
      %s42 = sphi 0, %s42
      %s44 = sphi 0, %s42
      %s45 = sphi 0, %s44
      %s59 = sphi 0, %s45
      %s65 = sphi 0, %s67
      %s68 = sphi 0, %s65
      %s69 = sphi 0, %s68
      %s85 = sphi 0, %s69
    $region4: #{tpu_custom_call.1} parent=1 // loop_header_branch
      %16 = sbr.rel (%p14) target = $region8
    $region5: #{tpu_custom_call.1} parent=1 // loop_body
      %s18 = ssub.s32 %s13, 1
      %s19 = ssub.s32 %s13, 2
      %s20 = sadd.s32 %s13, 1
      %s22 = sadd.s32 %s21, 1
      %p25 = scmp.eq.s32.totalorder %s13, 1
      %p26 = scmp.ne.s32.totalorder %s21, %s23
      %p27 = scmp.eq.s32.totalorder %s13, 0
      %p28 = por %p26, %p27
      %p29 = scmp.ne.s32.totalorder %s21, %s23
      %p30 = scmp.eq.s32.totalorder %s18, 1
      %p31 = por %p29, %p30
      %p32 = scmp.ne.s32.totalorder %s23, %s24
      %p33 = scmp.eq.s32.totalorder %s18, 0
      %p34 = por %p32, %p33
      %p35 = scmp.ne.s32.totalorder %s23, %s24
      %p36 = scmp.eq.s32.totalorder %s19, 1
      %p37 = por %p35, %p36
      %p39 = scmp.ne.s32.totalorder %s24, %s38
      %p40 = scmp.eq.s32.totalorder %s19, 0
      %p41 = por %p39, %p40
      %s43 = sadd.s32 %s42, 1
      %p46 = scmp.eq.s32.totalorder %s13, 1
      %p47 = scmp.ne.s32.totalorder %s42, %s44
      %p48 = scmp.eq.s32.totalorder %s13, 0
      %p49 = por %p47, %p48
      %p50 = scmp.ne.s32.totalorder %s42, %s44
      %p51 = scmp.eq.s32.totalorder %s18, 1
      %p52 = por %p50, %p51
      %p53 = scmp.ne.s32.totalorder %s44, %s45
      %p54 = scmp.eq.s32.totalorder %s18, 0
      %p55 = por %p53, %p54
      %p56 = scmp.ne.s32.totalorder %s44, %s45
      %p57 = scmp.eq.s32.totalorder %s19, 1
      %p58 = por %p56, %p57
      %p60 = scmp.ne.s32.totalorder %s45, %s59
      %p61 = scmp.eq.s32.totalorder %s19, 0
      %p62 = por %p60, %p61
      %s63 = ssub.s32 %s13, %s20
      %p64 = scmp.eq.s32.totalorder %s63, 0
      %s66 = sadd.s32 %s65, 1
      %s67 = scalar_select %p64, %s65, %s66
      %p70 = pneg %p64
      %p71 = scmp.eq.s32.totalorder %s13, 1
      %p72 = por %p70, %p71
      %p73 = scmp.ne.s32.totalorder %s65, %s68
      %p74 = scmp.eq.s32.totalorder %s13, 0
      %p75 = por %p73, %p74
      %p76 = scmp.ne.s32.totalorder %s65, %s68
      %p77 = scmp.eq.s32.totalorder %s18, 1
      %p78 = por %p76, %p77
      %p79 = scmp.ne.s32.totalorder %s68, %s69
      %p80 = scmp.eq.s32.totalorder %s18, 0
      %p81 = por %p79, %p80
      %p82 = scmp.ne.s32.totalorder %s68, %s69
      %p83 = scmp.eq.s32.totalorder %s19, 1
      %p84 = por %p82, %p83
      %p86 = scmp.ne.s32.totalorder %s69, %s85
      %p87 = scmp.eq.s32.totalorder %s19, 0
      %p88 = por %p86, %p87
      %p89 = scmp.le.s32.totalorder 1, %s13
      %p90 = scmp.lt.s32.totalorder %s13, 3
      %p91 = pnand %p89, %p90
      %p92 = pneg %p91
      // Predicated region
      $region9: #{tpu_custom_call.1} parent=5 // pred_check
        _
      $region10: #{tpu_custom_call.1} parent=5 // pred_check_branch
        %94 = sbr.rel (%p91) target = $region12
      $region11: #{tpu_custom_call.1} parent=5 // pred_region
        %s95 = ssub.s32 %s13, 1
        // Predicated region
        $region13: #{tpu_custom_call.1} parent=11 // pred_check
          %p96 = pneg %p34
        $region14: #{tpu_custom_call.1} parent=11 // pred_check_branch
          %98 = sbr.rel (%p96) target = $region16
        $region15: #{tpu_custom_call.1} parent=11 // pred_region
          %s100 = ssub.s32 128, 128
          %101 = vsyncadd [#allocation3], %s100
          %s103 = sshll.u32 [#allocation2], 4
          %s104 = int_to_ptr.vmem [resolvable:$true] %s103
          %106 = dma.hbm_to_vmem [thread:$0]  %s0, 128, %s104, [#allocation3]
        $region16: #{tpu_custom_call.1} parent=11 // pred_fallthru
          _
        // Predicated region
        $region17: #{tpu_custom_call.1} parent=11 // pred_check
          %p107 = pneg %p55
        $region18: #{tpu_custom_call.1} parent=11 // pred_check_branch
          %109 = sbr.rel (%p107) target = $region20
        $region19: #{tpu_custom_call.1} parent=11 // pred_region
          %s111 = ssub.s32 128, 128
          %112 = vsyncadd [#allocation6], %s111
          %s114 = sshll.u32 [#allocation5], 4
          %s115 = int_to_ptr.vmem [resolvable:$true] %s114
          %117 = dma.hbm_to_vmem [thread:$0]  %s1, 128, %s115, [#allocation6]
        $region20: #{tpu_custom_call.1} parent=11 // pred_fallthru
          _
      $region12: #{tpu_custom_call.1} parent=5 // pred_fallthru
        _
      %p118 = scmp.lt.s32.totalorder %s13, 2
      // Predicated region
      $region21: #{tpu_custom_call.1} parent=5 // pred_check
        %p119 = pneg %p118
      $region22: #{tpu_custom_call.1} parent=5 // pred_check_branch
        %121 = sbr.rel (%p119) target = $region24
      $region23: #{tpu_custom_call.1} parent=5 // pred_region
        _
      $region24: #{tpu_custom_call.1} parent=5 // pred_fallthru
        _
      %p122 = scmp.le.s32.totalorder 1, %s13
      %p123 = scmp.lt.s32.totalorder %s13, 3
      %p124 = pnand %p122, %p123
      %p125 = pneg %p124
      // Predicated region
      $region25: #{tpu_custom_call.1} parent=5 // pred_check
        _
      $region26: #{tpu_custom_call.1} parent=5 // pred_check_branch
        %127 = sbr.rel (%p124) target = $region28
      $region27: #{tpu_custom_call.1} parent=5 // pred_region
        %s128 = ssub.s32 %s13, 1
        // Predicated region
        $region29: #{tpu_custom_call.1} parent=27 // pred_check
          %p129 = pneg %p34
        $region30: #{tpu_custom_call.1} parent=27 // pred_check_branch
          %131 = sbr.rel (%p129) target = $region32
        $region31: #{tpu_custom_call.1} parent=27 // pred_region
          %132 = dma.done [#allocation3], 128
        $region32: #{tpu_custom_call.1} parent=27 // pred_fallthru
          _
        // Predicated region
        $region33: #{tpu_custom_call.1} parent=27 // pred_check
          %p133 = pneg %p55
        $region34: #{tpu_custom_call.1} parent=27 // pred_check_branch
          %135 = sbr.rel (%p133) target = $region36
        $region35: #{tpu_custom_call.1} parent=27 // pred_region
          %136 = dma.done [#allocation6], 128
        $region36: #{tpu_custom_call.1} parent=27 // pred_fallthru
          _
        %p137 = pneg %p34
        %p138 = pneg %p31
        %p139 = pneg %p55
        %p140 = pneg %p52
        %p141 = pneg %p81
        %p142 = pneg %p78
        %s143 = sand.u32 %s68, 1
        %s144 = scalar_lea.sflag [#allocation4], %s143
        %s145 = sand.u32 %s68, 1
        %s146 = smul.addr %s145, 512
        %s147 = scalar_lea.vmem [#allocation7], %s146
        %s148 = smul.u32 64, %s18
        %s149 = smul.u32 %s18, 64
        %v150 = vstv %s149
        %v151 = vadd.s32 %v150, 1
        %v152 = vadd.s32 %v150, 2
        %v153 = vadd.s32 %v150, 3
        %v154 = vadd.s32 %v150, 4
        %v155 = vadd.s32 %v150, 5
        %v156 = vadd.s32 %v150, 6
        %v157 = vadd.s32 %v150, 7
        %v158 = vadd.s32 %v150, 8
        %v159 = vadd.s32 %v150, 9
        %v160 = vadd.s32 %v150, 10
        %v161 = vadd.s32 %v150, 11
        %v162 = vadd.s32 %v150, 12
        %v163 = vadd.s32 %v150, 13
        %v164 = vadd.s32 %v150, 14
        %v165 = vadd.s32 %v150, 15
        %v166 = vadd.s32 %v150, 16
        %v167 = vadd.s32 %v150, 17
        %v168 = vadd.s32 %v150, 18
        %v169 = vadd.s32 %v150, 19
        %v170 = vadd.s32 %v150, 20
        %v171 = vadd.s32 %v150, 21
        %v172 = vadd.s32 %v150, 22
        %v173 = vadd.s32 %v150, 23
        %v174 = vadd.s32 %v150, 24
        %v175 = vadd.s32 %v150, 25
        %v176 = vadd.s32 %v150, 26
        %v177 = vadd.s32 %v150, 27
        %v178 = vadd.s32 %v150, 28
        %v179 = vadd.s32 %v150, 29
        %v180 = vadd.s32 %v150, 30
        %v181 = vadd.s32 %v150, 31
        %v182 = vadd.s32 %v150, 32
        %v183 = vadd.s32 %v150, 33
        %v184 = vadd.s32 %v150, 34
        %v185 = vadd.s32 %v150, 35
        %v186 = vadd.s32 %v150, 36
        %v187 = vadd.s32 %v150, 37
        %v188 = vadd.s32 %v150, 38
        %v189 = vadd.s32 %v150, 39
        %v190 = vadd.s32 %v150, 40
        %v191 = vadd.s32 %v150, 41
        %v192 = vadd.s32 %v150, 42
        %v193 = vadd.s32 %v150, 43
        %v194 = vadd.s32 %v150, 44
        %v195 = vadd.s32 %v150, 45
        %v196 = vadd.s32 %v150, 46
        %v197 = vadd.s32 %v150, 47
        %v198 = vadd.s32 %v150, 48
        %v199 = vadd.s32 %v150, 49
        %v200 = vadd.s32 %v150, 50
        %v201 = vadd.s32 %v150, 51
        %v202 = vadd.s32 %v150, 52
        %v203 = vadd.s32 %v150, 53
        %v204 = vadd.s32 %v150, 54
        %v205 = vadd.s32 %v150, 55
        %v206 = vadd.s32 %v150, 56
        %v207 = vadd.s32 %v150, 57
        %v208 = vadd.s32 %v150, 58
        %v209 = vadd.s32 %v150, 59
        %v210 = vadd.s32 %v150, 60
        %v211 = vadd.s32 %v150, 61
        %v212 = vadd.s32 %v150, 62
        %v213 = vadd.s32 %v150, 63
        %v214 = vmul.u32 %v150, 32
        %v215 = vmul.u32 %v151, 32
        %v216 = vmul.u32 %v152, 32
        %v217 = vmul.u32 %v153, 32
        %v218 = vmul.u32 %v154, 32
        %v219 = vmul.u32 %v155, 32
        %v220 = vmul.u32 %v156, 32
        %v221 = vmul.u32 %v157, 32
        %v222 = vmul.u32 %v158, 32
        %v223 = vmul.u32 %v159, 32
        %v224 = vmul.u32 %v160, 32
        %v225 = vmul.u32 %v161, 32
        %v226 = vmul.u32 %v162, 32
        %v227 = vmul.u32 %v163, 32
        %v228 = vmul.u32 %v164, 32
        %v229 = vmul.u32 %v165, 32
        %v230 = vmul.u32 %v166, 32
        %v231 = vmul.u32 %v167, 32
        %v232 = vmul.u32 %v168, 32
        %v233 = vmul.u32 %v169, 32
        %v234 = vmul.u32 %v170, 32
        %v235 = vmul.u32 %v171, 32
        %v236 = vmul.u32 %v172, 32
        %v237 = vmul.u32 %v173, 32
        %v238 = vmul.u32 %v174, 32
        %v239 = vmul.u32 %v175, 32
        %v240 = vmul.u32 %v176, 32
        %v241 = vmul.u32 %v177, 32
        %v242 = vmul.u32 %v178, 32
        %v243 = vmul.u32 %v179, 32
        %v244 = vmul.u32 %v180, 32
        %v245 = vmul.u32 %v181, 32
        %v246 = vmul.u32 %v182, 32
        %v247 = vmul.u32 %v183, 32
        %v248 = vmul.u32 %v184, 32
        %v249 = vmul.u32 %v185, 32
        %v250 = vmul.u32 %v186, 32
        %v251 = vmul.u32 %v187, 32
        %v252 = vmul.u32 %v188, 32
        %v253 = vmul.u32 %v189, 32
        %v254 = vmul.u32 %v190, 32
        %v255 = vmul.u32 %v191, 32
        %v256 = vmul.u32 %v192, 32
        %v257 = vmul.u32 %v193, 32
        %v258 = vmul.u32 %v194, 32
        %v259 = vmul.u32 %v195, 32
        %v260 = vmul.u32 %v196, 32
        %v261 = vmul.u32 %v197, 32
        %v262 = vmul.u32 %v198, 32
        %v263 = vmul.u32 %v199, 32
        %v264 = vmul.u32 %v200, 32
        %v265 = vmul.u32 %v201, 32
        %v266 = vmul.u32 %v202, 32
        %v267 = vmul.u32 %v203, 32
        %v268 = vmul.u32 %v204, 32
        %v269 = vmul.u32 %v205, 32
        %v270 = vmul.u32 %v206, 32
        %v271 = vmul.u32 %v207, 32
        %v272 = vmul.u32 %v208, 32
        %v273 = vmul.u32 %v209, 32
        %v274 = vmul.u32 %v210, 32
        %v275 = vmul.u32 %v211, 32
        %v276 = vmul.u32 %v212, 32
        %v277 = vmul.u32 %v213, 32
        %v278 = vcvt.s32.f32 %v214
        %v279 = vcvt.s32.f32 %v215
        %v280 = vcvt.s32.f32 %v216
        %v281 = vcvt.s32.f32 %v217
        %v282 = vcvt.s32.f32 %v218
        %v283 = vcvt.s32.f32 %v219
        %v284 = vcvt.s32.f32 %v220
        %v285 = vcvt.s32.f32 %v221
        %v286 = vcvt.s32.f32 %v222
        %v287 = vcvt.s32.f32 %v223
        %v288 = vcvt.s32.f32 %v224
        %v289 = vcvt.s32.f32 %v225
        %v290 = vcvt.s32.f32 %v226
        %v291 = vcvt.s32.f32 %v227
        %v292 = vcvt.s32.f32 %v228
        %v293 = vcvt.s32.f32 %v229
        %v294 = vcvt.s32.f32 %v230
        %v295 = vcvt.s32.f32 %v231
        %v296 = vcvt.s32.f32 %v232
        %v297 = vcvt.s32.f32 %v233
        %v298 = vcvt.s32.f32 %v234
        %v299 = vcvt.s32.f32 %v235
        %v300 = vcvt.s32.f32 %v236
        %v301 = vcvt.s32.f32 %v237
        %v302 = vcvt.s32.f32 %v238
        %v303 = vcvt.s32.f32 %v239
        %v304 = vcvt.s32.f32 %v240
        %v305 = vcvt.s32.f32 %v241
        %v306 = vcvt.s32.f32 %v242
        %v307 = vcvt.s32.f32 %v243
        %v308 = vcvt.s32.f32 %v244
        %v309 = vcvt.s32.f32 %v245
        %v310 = vcvt.s32.f32 %v246
        %v311 = vcvt.s32.f32 %v247
        %v312 = vcvt.s32.f32 %v248
        %v313 = vcvt.s32.f32 %v249
        %v314 = vcvt.s32.f32 %v250
        %v315 = vcvt.s32.f32 %v251
        %v316 = vcvt.s32.f32 %v252
        %v317 = vcvt.s32.f32 %v253
        %v318 = vcvt.s32.f32 %v254
        %v319 = vcvt.s32.f32 %v255
        %v320 = vcvt.s32.f32 %v256
        %v321 = vcvt.s32.f32 %v257
        %v322 = vcvt.s32.f32 %v258
        %v323 = vcvt.s32.f32 %v259
        %v324 = vcvt.s32.f32 %v260
        %v325 = vcvt.s32.f32 %v261
        %v326 = vcvt.s32.f32 %v262
        %v327 = vcvt.s32.f32 %v263
        %v328 = vcvt.s32.f32 %v264
        %v329 = vcvt.s32.f32 %v265
        %v330 = vcvt.s32.f32 %v266
        %v331 = vcvt.s32.f32 %v267
        %v332 = vcvt.s32.f32 %v268
        %v333 = vcvt.s32.f32 %v269
        %v334 = vcvt.s32.f32 %v270
        %v335 = vcvt.s32.f32 %v271
        %v336 = vcvt.s32.f32 %v272
        %v337 = vcvt.s32.f32 %v273
        %v338 = vcvt.s32.f32 %v274
        %v339 = vcvt.s32.f32 %v275
        %v340 = vcvt.s32.f32 %v276
        %v341 = vcvt.s32.f32 %v277
        %v342 = vld [vmem:[#allocation2] sm:$0xff]
        %v343 = vadd.f32 %v278, %v342
        %v344 = vadd.f32 %v279, %v342
        %v345 = vadd.f32 %v280, %v342
        %v346 = vadd.f32 %v281, %v342
        %v347 = vadd.f32 %v282, %v342
        %v348 = vadd.f32 %v283, %v342
        %v349 = vadd.f32 %v284, %v342
        %v350 = vadd.f32 %v285, %v342
        %v351 = vadd.f32 %v286, %v342
        %v352 = vadd.f32 %v287, %v342
        %v353 = vadd.f32 %v288, %v342
        %v354 = vadd.f32 %v289, %v342
        %v355 = vadd.f32 %v290, %v342
        %v356 = vadd.f32 %v291, %v342
        %v357 = vadd.f32 %v292, %v342
        %v358 = vadd.f32 %v293, %v342
        %v359 = vadd.f32 %v294, %v342
        %v360 = vadd.f32 %v295, %v342
        %v361 = vadd.f32 %v296, %v342
        %v362 = vadd.f32 %v297, %v342
        %v363 = vadd.f32 %v298, %v342
        %v364 = vadd.f32 %v299, %v342
        %v365 = vadd.f32 %v300, %v342
        %v366 = vadd.f32 %v301, %v342
        %v367 = vadd.f32 %v302, %v342
        %v368 = vadd.f32 %v303, %v342
        %v369 = vadd.f32 %v304, %v342
        %v370 = vadd.f32 %v305, %v342
        %v371 = vadd.f32 %v306, %v342
        %v372 = vadd.f32 %v307, %v342
        %v373 = vadd.f32 %v308, %v342
        %v374 = vadd.f32 %v309, %v342
        %v375 = vadd.f32 %v310, %v342
        %v376 = vadd.f32 %v311, %v342
        %v377 = vadd.f32 %v312, %v342
        %v378 = vadd.f32 %v313, %v342
        %v379 = vadd.f32 %v314, %v342
        %v380 = vadd.f32 %v315, %v342
        %v381 = vadd.f32 %v316, %v342
        %v382 = vadd.f32 %v317, %v342
        %v383 = vadd.f32 %v318, %v342
        %v384 = vadd.f32 %v319, %v342
        %v385 = vadd.f32 %v320, %v342
        %v386 = vadd.f32 %v321, %v342
        %v387 = vadd.f32 %v322, %v342
        %v388 = vadd.f32 %v323, %v342
        %v389 = vadd.f32 %v324, %v342
        %v390 = vadd.f32 %v325, %v342
        %v391 = vadd.f32 %v326, %v342
        %v392 = vadd.f32 %v327, %v342
        %v393 = vadd.f32 %v328, %v342
        %v394 = vadd.f32 %v329, %v342
        %v395 = vadd.f32 %v330, %v342
        %v396 = vadd.f32 %v331, %v342
        %v397 = vadd.f32 %v332, %v342
        %v398 = vadd.f32 %v333, %v342
        %v399 = vadd.f32 %v334, %v342
        %v400 = vadd.f32 %v335, %v342
        %v401 = vadd.f32 %v336, %v342
        %v402 = vadd.f32 %v337, %v342
        %v403 = vadd.f32 %v338, %v342
        %v404 = vadd.f32 %v339, %v342
        %v405 = vadd.f32 %v340, %v342
        %v406 = vadd.f32 %v341, %v342
        %v407 = vld [vmem:[#allocation5] sm:$0xff]
        %v408 = vmul.f32 %v343, %v407
        %v409 = vmul.f32 %v344, %v407
        %v410 = vmul.f32 %v345, %v407
        %v411 = vmul.f32 %v346, %v407
        %v412 = vmul.f32 %v347, %v407
        %v413 = vmul.f32 %v348, %v407
        %v414 = vmul.f32 %v349, %v407
        %v415 = vmul.f32 %v350, %v407
        %v416 = vmul.f32 %v351, %v407
        %v417 = vmul.f32 %v352, %v407
        %v418 = vmul.f32 %v353, %v407
        %v419 = vmul.f32 %v354, %v407
        %v420 = vmul.f32 %v355, %v407
        %v421 = vmul.f32 %v356, %v407
        %v422 = vmul.f32 %v357, %v407
        %v423 = vmul.f32 %v358, %v407
        %v424 = vmul.f32 %v359, %v407
        %v425 = vmul.f32 %v360, %v407
        %v426 = vmul.f32 %v361, %v407
        %v427 = vmul.f32 %v362, %v407
        %v428 = vmul.f32 %v363, %v407
        %v429 = vmul.f32 %v364, %v407
        %v430 = vmul.f32 %v365, %v407
        %v431 = vmul.f32 %v366, %v407
        %v432 = vmul.f32 %v367, %v407
        %v433 = vmul.f32 %v368, %v407
        %v434 = vmul.f32 %v369, %v407
        %v435 = vmul.f32 %v370, %v407
        %v436 = vmul.f32 %v371, %v407
        %v437 = vmul.f32 %v372, %v407
        %v438 = vmul.f32 %v373, %v407
        %v439 = vmul.f32 %v374, %v407
        %v440 = vmul.f32 %v375, %v407
        %v441 = vmul.f32 %v376, %v407
        %v442 = vmul.f32 %v377, %v407
        %v443 = vmul.f32 %v378, %v407
        %v444 = vmul.f32 %v379, %v407
        %v445 = vmul.f32 %v380, %v407
        %v446 = vmul.f32 %v381, %v407
        %v447 = vmul.f32 %v382, %v407
        %v448 = vmul.f32 %v383, %v407
        %v449 = vmul.f32 %v384, %v407
        %v450 = vmul.f32 %v385, %v407
        %v451 = vmul.f32 %v386, %v407
        %v452 = vmul.f32 %v387, %v407
        %v453 = vmul.f32 %v388, %v407
        %v454 = vmul.f32 %v389, %v407
        %v455 = vmul.f32 %v390, %v407
        %v456 = vmul.f32 %v391, %v407
        %v457 = vmul.f32 %v392, %v407
        %v458 = vmul.f32 %v393, %v407
        %v459 = vmul.f32 %v394, %v407
        %v460 = vmul.f32 %v395, %v407
        %v461 = vmul.f32 %v396, %v407
        %v462 = vmul.f32 %v397, %v407
        %v463 = vmul.f32 %v398, %v407
        %v464 = vmul.f32 %v399, %v407
        %v465 = vmul.f32 %v400, %v407
        %v466 = vmul.f32 %v401, %v407
        %v467 = vmul.f32 %v402, %v407
        %v468 = vmul.f32 %v403, %v407
        %v469 = vmul.f32 %v404, %v407
        %v470 = vmul.f32 %v405, %v407
        %v471 = vmul.f32 %v406, %v407
        %472 = vst [vmem:[%s147] sm:$0xff] %v408
        %473 = vst [vmem:[%s147 + $0x8] sm:$0xff] %v409
        %474 = vst [vmem:[%s147 + $0x10] sm:$0xff] %v410
        %475 = vst [vmem:[%s147 + $0x18] sm:$0xff] %v411
        %476 = vst [vmem:[%s147 + $0x20] sm:$0xff] %v412
        %477 = vst [vmem:[%s147 + $0x28] sm:$0xff] %v413
        %478 = vst [vmem:[%s147 + $0x30] sm:$0xff] %v414
        %479 = vst [vmem:[%s147 + $0x38] sm:$0xff] %v415
        %480 = vst [vmem:[%s147 + $0x40] sm:$0xff] %v416
        %481 = vst [vmem:[%s147 + $0x48] sm:$0xff] %v417
        %482 = vst [vmem:[%s147 + $0x50] sm:$0xff] %v418
        %483 = vst [vmem:[%s147 + $0x58] sm:$0xff] %v419
        %484 = vst [vmem:[%s147 + $0x60] sm:$0xff] %v420
        %485 = vst [vmem:[%s147 + $0x68] sm:$0xff] %v421
        %486 = vst [vmem:[%s147 + $0x70] sm:$0xff] %v422
        %487 = vst [vmem:[%s147 + $0x78] sm:$0xff] %v423
        %488 = vst [vmem:[%s147 + $0x80] sm:$0xff] %v424
        %489 = vst [vmem:[%s147 + $0x88] sm:$0xff] %v425
        %490 = vst [vmem:[%s147 + $0x90] sm:$0xff] %v426
        %491 = vst [vmem:[%s147 + $0x98] sm:$0xff] %v427
        %492 = vst [vmem:[%s147 + $0xa0] sm:$0xff] %v428
        %493 = vst [vmem:[%s147 + $0xa8] sm:$0xff] %v429
        %494 = vst [vmem:[%s147 + $0xb0] sm:$0xff] %v430
        %495 = vst [vmem:[%s147 + $0xb8] sm:$0xff] %v431
        %496 = vst [vmem:[%s147 + $0xc0] sm:$0xff] %v432
        %497 = vst [vmem:[%s147 + $0xc8] sm:$0xff] %v433
        %498 = vst [vmem:[%s147 + $0xd0] sm:$0xff] %v434
        %499 = vst [vmem:[%s147 + $0xd8] sm:$0xff] %v435
        %500 = vst [vmem:[%s147 + $0xe0] sm:$0xff] %v436
        %501 = vst [vmem:[%s147 + $0xe8] sm:$0xff] %v437
        %502 = vst [vmem:[%s147 + $0xf0] sm:$0xff] %v438
        %503 = vst [vmem:[%s147 + $0xf8] sm:$0xff] %v439
        %504 = vst [vmem:[%s147 + $0x100] sm:$0xff] %v440
        %505 = vst [vmem:[%s147 + $0x108] sm:$0xff] %v441
        %506 = vst [vmem:[%s147 + $0x110] sm:$0xff] %v442
        %507 = vst [vmem:[%s147 + $0x118] sm:$0xff] %v443
        %508 = vst [vmem:[%s147 + $0x120] sm:$0xff] %v444
        %509 = vst [vmem:[%s147 + $0x128] sm:$0xff] %v445
        %510 = vst [vmem:[%s147 + $0x130] sm:$0xff] %v446
        %511 = vst [vmem:[%s147 + $0x138] sm:$0xff] %v447
        %512 = vst [vmem:[%s147 + $0x140] sm:$0xff] %v448
        %513 = vst [vmem:[%s147 + $0x148] sm:$0xff] %v449
        %514 = vst [vmem:[%s147 + $0x150] sm:$0xff] %v450
        %515 = vst [vmem:[%s147 + $0x158] sm:$0xff] %v451
        %516 = vst [vmem:[%s147 + $0x160] sm:$0xff] %v452
        %517 = vst [vmem:[%s147 + $0x168] sm:$0xff] %v453
        %518 = vst [vmem:[%s147 + $0x170] sm:$0xff] %v454
        %519 = vst [vmem:[%s147 + $0x178] sm:$0xff] %v455
        %520 = vst [vmem:[%s147 + $0x180] sm:$0xff] %v456
        %521 = vst [vmem:[%s147 + $0x188] sm:$0xff] %v457
        %522 = vst [vmem:[%s147 + $0x190] sm:$0xff] %v458
        %523 = vst [vmem:[%s147 + $0x198] sm:$0xff] %v459
        %524 = vst [vmem:[%s147 + $0x1a0] sm:$0xff] %v460
        %525 = vst [vmem:[%s147 + $0x1a8] sm:$0xff] %v461
        %526 = vst [vmem:[%s147 + $0x1b0] sm:$0xff] %v462
        %527 = vst [vmem:[%s147 + $0x1b8] sm:$0xff] %v463
        %528 = vst [vmem:[%s147 + $0x1c0] sm:$0xff] %v464
        %529 = vst [vmem:[%s147 + $0x1c8] sm:$0xff] %v465
        %530 = vst [vmem:[%s147 + $0x1d0] sm:$0xff] %v466
        %531 = vst [vmem:[%s147 + $0x1d8] sm:$0xff] %v467
        %532 = vst [vmem:[%s147 + $0x1e0] sm:$0xff] %v468
        %533 = vst [vmem:[%s147 + $0x1e8] sm:$0xff] %v469
        %534 = vst [vmem:[%s147 + $0x1f0] sm:$0xff] %v470
        %535 = vst [vmem:[%s147 + $0x1f8] sm:$0xff] %v471
        %s536 = sand.u32 %s68, 1
        %s537 = scalar_lea.sflag [#allocation4], %s536
        %s538 = sand.u32 %s68, 1
        %s539 = smul.addr %s538, 512
        %s540 = scalar_lea.vmem [#allocation7], %s539
        // Predicated region
        $region37: #{tpu_custom_call.1} parent=27 // pred_check
          %p541 = pneg %p78
        $region38: #{tpu_custom_call.1} parent=27 // pred_check_branch
          %543 = sbr.rel (%p541) target = $region40
        $region39: #{tpu_custom_call.1} parent=27 // pred_region
          %s544 = smul.u32 64, %s18
          %s546 = ssub.s32 8192, 8192
          %547 = vsyncadd %s537, %s546
          %s548 = smul.addr %s544, 128
          %s549 = scalar_lea.hbm %s2, %s548
          %s550 = sshll.u32 %s540, 4
          %s551 = int_to_ptr.vmem [resolvable:$true] %s550
          %556 = dma.vmem_to_hbm [thread:$0]  %s551, 8192, %s549, %s537, 128, 128, 8
        $region40: #{tpu_custom_call.1} parent=27 // pred_fallthru
          _
      $region28: #{tpu_custom_call.1} parent=5 // pred_fallthru
        _
      %p557 = scmp.le.s32.totalorder 2, %s13
      // Predicated region
      $region41: #{tpu_custom_call.1} parent=5 // pred_check
        %p558 = pneg %p557
      $region42: #{tpu_custom_call.1} parent=5 // pred_check_branch
        %560 = sbr.rel (%p558) target = $region44
      $region43: #{tpu_custom_call.1} parent=5 // pred_region
        %s561 = ssub.s32 %s13, 2
        // Predicated region
        $region45: #{tpu_custom_call.1} parent=43 // pred_check
          %p562 = pneg %p84
        $region46: #{tpu_custom_call.1} parent=43 // pred_check_branch
          %564 = sbr.rel (%p562) target = $region48
        $region47: #{tpu_custom_call.1} parent=43 // pred_region
          %s565 = sand.u32 %s69, 1
          %s566 = scalar_lea.sflag [#allocation4], %s565
          %s567 = sand.u32 %s69, 1
          %s568 = smul.addr %s567, 512
          %s569 = scalar_lea.vmem [#allocation7], %s568
          %570 = dma.done %s566, 8192
        $region48: #{tpu_custom_call.1} parent=43 // pred_fallthru
          _
      $region44: #{tpu_custom_call.1} parent=5 // pred_fallthru
        _
    $region6: #{tpu_custom_call.1} parent=1 // loop_footer
      %s17 = sadd.s32 1, %s13
    $region7: #{tpu_custom_call.1} parent=1 // loop_footer_branch
      %12 = sbr.rel target = $region3
    $region8: #{tpu_custom_call.1} parent=1 // loop_exit
      _
    %571 = vsyncpa [#allocation3], 1
    %s572 = scalar_lea.sflag [#allocation3], 1
    %573 = vsyncpa %s572, 1
    %574 = vsyncpa [#allocation6], 1
    %575 = vsyncpa [#allocation4], 1
    %s576 = scalar_lea.sflag [#allocation4], 1
    %577 = vsyncpa %s576, 1

</llo_original>
